<compile_context>
chip_gen: v7x
topology: tpu7x:2x2x1
jax: 0.10.0
libtpu: 0.0.40
codegen_flags: <defaults>
</compile_context>

<pallas_src>
import jax
import jax.numpy as jnp
from jax.experimental import pallas as pl
from jax.experimental.pallas import tpu as pltpu


def _round_up(x, m):
    return ((x + m - 1) // m) * m


def _critic_kernel(s_ref, a_ref, w1s_ref, w1a_ref, b1_ref,
                   w2_ref, b2_ref, w3_ref, b3_ref, o_ref):
    """One batch tile of: relu(s@W1s + a@W1a + b1) @W2+b2 .relu @W3+b3."""
    # Layer 1 -- split matmul replaces the host-side concat (MXU, f32 accum).
    h1 = jnp.dot(s_ref[...], w1s_ref[...], preferred_element_type=jnp.float32)
    h1 = h1 + jnp.dot(a_ref[...], w1a_ref[...],
                      preferred_element_type=jnp.float32)
    h1 = jnp.maximum(h1 + b1_ref[...], 0.0)          # bias + relu in f32 (VPU)
    # Layer 2
    h2 = jnp.dot(h1.astype(jnp.bfloat16), w2_ref[...],
                 preferred_element_type=jnp.float32)
    h2 = jnp.maximum(h2 + b2_ref[...], 0.0)
    # Head
    out = jnp.dot(h2.astype(jnp.bfloat16), w3_ref[...],
                  preferred_element_type=jnp.float32)
    o_ref[...] = (out + b3_ref[...]).astype(o_ref.dtype)


@jax.jit
def critic_forward(state, action, kernel_params):
    """state: [B, S] f32, action: [B, A] f32 -> [B, A] f32."""
    w1s, w1a, b1, w2, b2, w3, b3 = kernel_params
    B, S = state.shape
    A = action.shape[1]
    H1P, H2P, OUTP = w1s.shape[1], w2.shape[1], w3.shape[1]

    # Batch tile: 256 rows fills the v6e/v7x MXU; small batches use one tile.
    TB = 256 if B >= 256 else _round_up(max(B, 1), 8)
    B_pad = _round_up(B, TB)
    nb = B_pad // TB

    if B_pad != B:
        state = jnp.pad(state, ((0, B_pad - B), (0, 0)))
        action = jnp.pad(action, ((0, B_pad - B), (0, 0)))
    state = state.astype(jnp.bfloat16)
    action = action.astype(jnp.bfloat16)

    nbytes = lambda a: a.size * a.dtype.itemsize
    flops = 2 * B_pad * (S * H1P + A * H1P + H1P * H2P + H2P * OUTP)
    bytes_accessed = (nbytes(state) + nbytes(action)
                      + sum(nbytes(a) for a in kernel_params)
                      + B_pad * OUTP * 4)

    act_spec = lambda feat: pl.BlockSpec((TB, feat), lambda i: (i, 0))
    resident = lambda arr: pl.BlockSpec(arr.shape, lambda i: (0, 0))

    out = pl.pallas_call(
        _critic_kernel,
        out_shape=jax.ShapeDtypeStruct((B_pad, OUTP), jnp.float32),
        grid=(nb,),
        in_specs=[
            act_spec(S), act_spec(A),
            resident(w1s), resident(w1a), resident(b1),
            resident(w2), resident(b2),
            resident(w3), resident(b3),
        ],
        out_specs=pl.BlockSpec((TB, OUTP), lambda i: (i, 0)),
        compiler_params=pltpu.CompilerParams(
            dimension_semantics=("parallel",),   # megacore on v7x
            vmem_limit_bytes=16 << 20,           # actual footprint << 16 MiB
        ),
        cost_estimate=pl.CostEstimate(flops=flops, transcendentals=0,
                                      bytes_accessed=bytes_accessed),
    )(state, action, w1s, w1a, b1, w2, b2, w3, b3)

    # Strip batch padding and the lane padding of the head output.
    return out[:B, :A]


def init_critic_params(key, state_size, action_size):
    """f32 master params matching the PyTorch module (weights as [in, out])."""
    in0 = state_size + action_size
    sizes = [in0, 400, 300, action_size]
    k1, k2, k3, kb1, kb2, kb3 = jax.random.split(key, 6)

    def fanin_uniform(k, fan_in, shape):
        bound = 1.0 / jnp.sqrt(jnp.float32(fan_in))
        return jax.random.uniform(k, shape, jnp.float32, -bound, bound)

    w1 = fanin_uniform(k1, sizes[0], (sizes[0], sizes[1]))
    w2 = fanin_uniform(k2, sizes[1], (sizes[1], sizes[2]))
    w3 = jax.random.uniform(k3, (sizes[2], sizes[3]), jnp.float32,
                            -3 * 0.001, 3 * 0.001)
    # Biases keep nn.Linear's default init U(+-1/sqrt(fan_in)); the reference
    # module only overrides head.weight, not head.bias.
    b1 = fanin_uniform(kb1, sizes[0], (1, sizes[1]))
    b2 = fanin_uniform(kb2, sizes[1], (1, sizes[2]))
    b3 = fanin_uniform(kb3, sizes[2], (1, sizes[3]))
    return (w1, b1, w2, b2, w3, b3)


def _pad_to(x, shape):
    return jnp.pad(x, [(0, t - s) for s, t in zip(x.shape, shape)])


def prepare_critic_params(params, state_size, action_size):
    """Split W1, zero-pad feature dims to multiples of 128, cast weights bf16."""
    w1, b1, w2, b2, w3, b3 = params
    H1, H2, OUT = w1.shape[1], w2.shape[1], w3.shape[1]
    H1P, H2P = _round_up(H1, 128), _round_up(H2, 128)
    OUTP = _round_up(OUT, 128)
    w1s = _pad_to(w1[:state_size], (state_size, H1P)).astype(jnp.bfloat16)
    w1a = _pad_to(w1[state_size:], (action_size, H1P)).astype(jnp.bfloat16)
    b1p = _pad_to(b1, (1, H1P)).astype(jnp.float32)
    w2p = _pad_to(w2, (H1P, H2P)).astype(jnp.bfloat16)
    b2p = _pad_to(b2, (1, H2P)).astype(jnp.float32)
    w3p = _pad_to(w3, (H2P, OUTP)).astype(jnp.bfloat16)
    b3p = _pad_to(b3, (1, OUTP)).astype(jnp.float32)
    return (w1s, w1a, b1p, w2p, b2p, w3p, b3p)


def critic_reference(state, action, params):
    """Pure-JAX f32 reference for correctness checking."""
    w1, b1, w2, b2, w3, b3 = params
    x = jnp.concatenate([state, action], axis=1)
    h1 = jnp.maximum(x @ w1 + b1, 0.0)
    h2 = jnp.maximum(h1 @ w2 + b2, 0.0)
    return h2 @ w3 + b3


if __name__ == "__main__":
    key = jax.random.PRNGKey(0)
    state_size, action_size = 24, 4

    kp = jax.random.fold_in(key, 0)
    params = init_critic_params(kp, state_size, action_size)
    kparams = prepare_critic_params(params, state_size, action_size)

    # batch=8  -> single tile (TB=8), exercises the small-batch path.
    # batch=264 -> TB=256, padded to 512, grid=(2,), exercises pipelining,
    #              batch padding, and the parallel batch axis.
    for batch in (8, 264):
        kb = jax.random.fold_in(key, batch)
        ks, ka = jax.random.split(kb)
        state = jax.random.normal(ks, (batch, state_size), jnp.float32)
        action = jax.random.normal(ka, (batch, action_size), jnp.float32)

        out = jax.block_until_ready(critic_forward(state, action, kparams))
        ref = critic_reference(state, action, params)

        assert out.shape == (batch, action_size), out.shape
        max_err = float(jnp.max(jnp.abs(out - ref)))
        # bf16 MXU operands vs f32 reference -> loosened tolerance.
        assert jnp.allclose(out, ref, atol=2e-2, rtol=2e-2), (
            f"mismatch vs reference (batch={batch}, max_err={max_err})")

    print("KERNEL_OK")
</pallas_src>

<mosaic_0001>
module attributes {stable_mosaic.version = 11 : i64} {
  func.func @_critic_kernel(%arg0: i32, %arg1: memref<8x24xbf16, #tpu.memory_space<vmem>>, %arg2: memref<8x4xbf16, #tpu.memory_space<vmem>>, %arg3: memref<24x512xbf16, #tpu.memory_space<vmem>>, %arg4: memref<4x512xbf16, #tpu.memory_space<vmem>>, %arg5: memref<1x512xf32, #tpu.memory_space<vmem>>, %arg6: memref<512x384xbf16, #tpu.memory_space<vmem>>, %arg7: memref<1x384xf32, #tpu.memory_space<vmem>>, %arg8: memref<384x128xbf16, #tpu.memory_space<vmem>>, %arg9: memref<1x128xf32, #tpu.memory_space<vmem>>, %arg10: memref<8x128xf32, #tpu.memory_space<vmem>>) attributes {dimension_semantics = [#tpu.dimension_semantics<parallel>], iteration_bounds = array<i64: 1>, scalar_prefetch = 0 : i64, scratch_operands = 0 : i64, tpu.core_type = #tpu.core_type<tc>, window_params = [{transform_indices = @transform_0, window_bounds = array<i64: 8, 24>}, {transform_indices = @transform_1, window_bounds = array<i64: 8, 4>}, {pipeline_mode = #tpu.pipeline_mode<synchronous>, transform_indices = @transform_2, window_bounds = array<i64: 24, 512>}, {pipeline_mode = #tpu.pipeline_mode<synchronous>, transform_indices = @transform_3, window_bounds = array<i64: 4, 512>}, {pipeline_mode = #tpu.pipeline_mode<synchronous>, transform_indices = @transform_4, window_bounds = array<i64: 1, 512>}, {pipeline_mode = #tpu.pipeline_mode<synchronous>, transform_indices = @transform_5, window_bounds = array<i64: 512, 384>}, {pipeline_mode = #tpu.pipeline_mode<synchronous>, transform_indices = @transform_6, window_bounds = array<i64: 1, 384>}, {pipeline_mode = #tpu.pipeline_mode<synchronous>, transform_indices = @transform_7, window_bounds = array<i64: 384, 128>}, {pipeline_mode = #tpu.pipeline_mode<synchronous>, transform_indices = @transform_8, window_bounds = array<i64: 1, 128>}, {transform_indices = @transform_9, window_bounds = array<i64: 8, 128>}]} {
    %c0 = arith.constant 0 : index
    %c0_0 = arith.constant 0 : index
    %0 = vector.load %arg1[%c0, %c0_0] : memref<8x24xbf16, #tpu.memory_space<vmem>>, vector<8x24xbf16>
    %c0_1 = arith.constant 0 : index
    %c0_2 = arith.constant 0 : index
    %1 = vector.load %arg3[%c0_1, %c0_2] : memref<24x512xbf16, #tpu.memory_space<vmem>>, vector<24x512xbf16>
    %cst = arith.constant dense<0.000000e+00> : vector<8x512xf32>
    %2 = tpu.matmul %0, %1, %cst {dimension_numbers = #tpu.dot_dimension_numbers<[1], [0], [0], [1], [0, 0, 1, 1], [], []>} : vector<8x24xbf16>, vector<24x512xbf16>, vector<8x512xf32> -> vector<8x512xf32>
    %c0_3 = arith.constant 0 : index
    %c0_4 = arith.constant 0 : index
    %3 = vector.load %arg2[%c0_3, %c0_4] : memref<8x4xbf16, #tpu.memory_space<vmem>>, vector<8x4xbf16>
    %c0_5 = arith.constant 0 : index
    %c0_6 = arith.constant 0 : index
    %4 = vector.load %arg4[%c0_5, %c0_6] : memref<4x512xbf16, #tpu.memory_space<vmem>>, vector<4x512xbf16>
    %cst_7 = arith.constant dense<0.000000e+00> : vector<8x512xf32>
    %5 = tpu.matmul %3, %4, %cst_7 {dimension_numbers = #tpu.dot_dimension_numbers<[1], [0], [0], [1], [0, 0, 1, 1], [], []>} : vector<8x4xbf16>, vector<4x512xbf16>, vector<8x512xf32> -> vector<8x512xf32>
    %6 = arith.addf %2, %5 : vector<8x512xf32>
    %c0_8 = arith.constant 0 : index
    %c0_9 = arith.constant 0 : index
    %7 = vector.load %arg5[%c0_8, %c0_9] : memref<1x512xf32, #tpu.memory_space<vmem>>, vector<1x512xf32>
    %8 = vector.broadcast %7 : vector<1x512xf32> to vector<8x512xf32>
    %9 = arith.addf %6, %8 : vector<8x512xf32>
    %cst_10 = arith.constant 0.000000e+00 : f32
    %10 = vector.broadcast %cst_10 : f32 to vector<8x512xf32>
    %11 = arith.maximumf %9, %10 : vector<8x512xf32>
    %12 = arith.truncf %11 : vector<8x512xf32> to vector<8x512xbf16>
    %c0_11 = arith.constant 0 : index
    %c0_12 = arith.constant 0 : index
    %13 = vector.load %arg6[%c0_11, %c0_12] : memref<512x384xbf16, #tpu.memory_space<vmem>>, vector<512x384xbf16>
    %cst_13 = arith.constant dense<0.000000e+00> : vector<8x384xf32>
    %14 = tpu.matmul %12, %13, %cst_13 {dimension_numbers = #tpu.dot_dimension_numbers<[1], [0], [0], [1], [0, 0, 1, 1], [], []>} : vector<8x512xbf16>, vector<512x384xbf16>, vector<8x384xf32> -> vector<8x384xf32>
    %c0_14 = arith.constant 0 : index
    %c0_15 = arith.constant 0 : index
    %15 = vector.load %arg7[%c0_14, %c0_15] : memref<1x384xf32, #tpu.memory_space<vmem>>, vector<1x384xf32>
    %16 = vector.broadcast %15 : vector<1x384xf32> to vector<8x384xf32>
    %17 = arith.addf %14, %16 : vector<8x384xf32>
    %cst_16 = arith.constant 0.000000e+00 : f32
    %18 = vector.broadcast %cst_16 : f32 to vector<8x384xf32>
    %19 = arith.maximumf %17, %18 : vector<8x384xf32>
    %20 = arith.truncf %19 : vector<8x384xf32> to vector<8x384xbf16>
    %c0_17 = arith.constant 0 : index
    %c0_18 = arith.constant 0 : index
    %21 = vector.load %arg8[%c0_17, %c0_18] : memref<384x128xbf16, #tpu.memory_space<vmem>>, vector<384x128xbf16>
    %cst_19 = arith.constant dense<0.000000e+00> : vector<8x128xf32>
    %22 = tpu.matmul %20, %21, %cst_19 {dimension_numbers = #tpu.dot_dimension_numbers<[1], [0], [0], [1], [0, 0, 1, 1], [], []>} : vector<8x384xbf16>, vector<384x128xbf16>, vector<8x128xf32> -> vector<8x128xf32>
    %c0_20 = arith.constant 0 : index
    %c0_21 = arith.constant 0 : index
    %23 = vector.load %arg9[%c0_20, %c0_21] : memref<1x128xf32, #tpu.memory_space<vmem>>, vector<1x128xf32>
    %24 = vector.broadcast %23 : vector<1x128xf32> to vector<8x128xf32>
    %25 = arith.addf %22, %24 : vector<8x128xf32>
    %c0_22 = arith.constant 0 : index
    %c0_23 = arith.constant 0 : index
    %26 = vector.load %arg10[%c0_22, %c0_23] : memref<8x128xf32, #tpu.memory_space<vmem>>, vector<8x128xf32>
    tpu.vector_store %arg10[%c0_22, %c0_23], %25 {strides = array<i32>} : memref<8x128xf32, #tpu.memory_space<vmem>>, vector<8x128xf32>,
    return
  }
  func.func @transform_0(%arg0: i32) -> (i32, i32) {
    %c0_i32 = arith.constant 0 : i32
    %c0_i32_0 = arith.constant 0 : i32
    return %arg0, %c0_i32 : i32, i32
  }
  func.func @transform_1(%arg0: i32) -> (i32, i32) {
    %c0_i32 = arith.constant 0 : i32
    %c0_i32_0 = arith.constant 0 : i32
    return %arg0, %c0_i32 : i32, i32
  }
  func.func @transform_2(%arg0: i32) -> (i32, i32) {
    %c0_i32 = arith.constant 0 : i32
    %c0_i32_0 = arith.constant 0 : i32
    %c0_i32_1 = arith.constant 0 : i32
    return %c0_i32, %c0_i32_0 : i32, i32
  }
  func.func @transform_3(%arg0: i32) -> (i32, i32) {
    %c0_i32 = arith.constant 0 : i32
    %c0_i32_0 = arith.constant 0 : i32
    %c0_i32_1 = arith.constant 0 : i32
    return %c0_i32, %c0_i32_0 : i32, i32
  }
  func.func @transform_4(%arg0: i32) -> (i32, i32) {
    %c0_i32 = arith.constant 0 : i32
    %c0_i32_0 = arith.constant 0 : i32
    %c0_i32_1 = arith.constant 0 : i32
    return %c0_i32, %c0_i32_0 : i32, i32
  }
  func.func @transform_5(%arg0: i32) -> (i32, i32) {
    %c0_i32 = arith.constant 0 : i32
    %c0_i32_0 = arith.constant 0 : i32
    %c0_i32_1 = arith.constant 0 : i32
    return %c0_i32, %c0_i32_0 : i32, i32
  }
  func.func @transform_6(%arg0: i32) -> (i32, i32) {
    %c0_i32 = arith.constant 0 : i32
    %c0_i32_0 = arith.constant 0 : i32
    %c0_i32_1 = arith.constant 0 : i32
    return %c0_i32, %c0_i32_0 : i32, i32
  }
  func.func @transform_7(%arg0: i32) -> (i32, i32) {
    %c0_i32 = arith.constant 0 : i32
    %c0_i32_0 = arith.constant 0 : i32
    %c0_i32_1 = arith.constant 0 : i32
    return %c0_i32, %c0_i32_0 : i32, i32
  }
  func.func @transform_8(%arg0: i32) -> (i32, i32) {
    %c0_i32 = arith.constant 0 : i32
    %c0_i32_0 = arith.constant 0 : i32
    %c0_i32_1 = arith.constant 0 : i32
    return %c0_i32, %c0_i32_0 : i32, i32
  }
  func.func @transform_9(%arg0: i32) -> (i32, i32) {
    %c0_i32 = arith.constant 0 : i32
    %c0_i32_0 = arith.constant 0 : i32
    return %arg0, %c0_i32 : i32, i32
  }
}

</mosaic_0001>

<llo_original>
// kernel: critic_forward.1
$region0: #{critic_forward.1}
  #allocation0 [shape = 'u32[]', space=smem, size = 0x4, offset = 0x4, fixed_abs, tag = 'smem constant byte address 0x4 - core index']
  #allocation1 [shape = 'u32[144,128]{1,0:T(1,128)}', space=vmem, size = 0x12000, scoped, tag = 'internal scratch']
  %s0 = inlined_call_operand.vmem [shape: bf16[8,24], index: 0, kind: input, shape index: {}]
  %s1 = inlined_call_operand.vmem [shape: bf16[8,4], index: 1, kind: input, shape index: {}]
  %s2 = inlined_call_operand.hbm [shape: bf16[24,512], index: 2, kind: input, shape index: {}]
  %s3 = inlined_call_operand.vmem [shape: bf16[4,512], index: 3, kind: input, shape index: {}]
  %s4 = inlined_call_operand.vmem [shape: f32[1,512], index: 4, kind: input, shape index: {}]
  %s5 = inlined_call_operand.hbm [shape: bf16[512,384], index: 5, kind: input, shape index: {}]
  %s6 = inlined_call_operand.vmem [shape: f32[1,384], index: 6, kind: input, shape index: {}]
  %s7 = inlined_call_operand.hbm [shape: bf16[384,128], index: 7, kind: input, shape index: {}]
  %s8 = inlined_call_operand.vmem [shape: f32[1,128], index: 8, kind: input, shape index: {}]
  %s9 = inlined_call_operand.vmem [shape: f32[8,128], index: 9, kind: output, shape index: {}]
  %s10 = sld [smem:[#allocation0]]
  $region58: #{critic_forward.1} parent=0
    _
  %s12 = ssub.s32 1, %s10
  %s13 = scalar_select 0, %s12, %s10
  $region1: #{critic_forward.1} parent=0
    #allocation2 [shape = 'u8[24576]{0}', space=vmem, size = 0x6000, scoped, tag = 'input window, operand 2, single buffered']
    #allocation3 [shape = 's32[1]{0}', space=sflag, size = 0x4, scoped, tag = 'scoped memory for critic_forward.1']
    #allocation4 [shape = 'u8[393216]{0}', space=vmem, size = 0x60000, scoped, tag = 'input window, operand 5, single buffered']
    #allocation5 [shape = 's32[1]{0}', space=sflag, size = 0x4, scoped, tag = 'scoped memory for critic_forward.1']
    #allocation6 [shape = 'u8[98304]{0}', space=vmem, size = 0x18000, scoped, tag = 'input window, operand 7, single buffered']
    %14 = vsyncpa [#allocation3], 0
    %15 = vsyncpa [#allocation5], 0
    // Predicated region
    $region2: #{critic_forward.1} parent=1 // pred_check
      _
    $region3: #{critic_forward.1} parent=1 // pred_check_branch
      %17 = sbr.rel (0) target = $region5
    $region4: #{critic_forward.1} parent=1 // pred_region
      _
    $region5: #{critic_forward.1} parent=1 // pred_fallthru
      _
    // Predicated region
    $region6: #{critic_forward.1} parent=1 // pred_check
      _
    $region7: #{critic_forward.1} parent=1 // pred_check_branch
      %19 = sbr.rel (0) target = $region9
    $region8: #{critic_forward.1} parent=1 // pred_region
      _
    $region9: #{critic_forward.1} parent=1 // pred_fallthru
      _
    // Predicated region
    $region10: #{critic_forward.1} parent=1 // pred_check
      _
    $region11: #{critic_forward.1} parent=1 // pred_check_branch
      %21 = sbr.rel (0) target = $region13
    $region12: #{critic_forward.1} parent=1 // pred_region
      %s23 = ssub.s32 768, 768
      %24 = vsyncadd [#allocation3], %s23
      %s25 = sshll.u32 [#allocation2], 4
      %s26 = int_to_ptr.vmem [resolvable:$true] %s25
      %31 = dma.hbm_to_vmem [thread:$0]  %s2, 768, %s26, [#allocation3], 256, 256, 16
    $region13: #{critic_forward.1} parent=1 // pred_fallthru
      _
    // Predicated region
    $region14: #{critic_forward.1} parent=1 // pred_check
      _
    $region15: #{critic_forward.1} parent=1 // pred_check_branch
      %33 = sbr.rel (0) target = $region17
    $region16: #{critic_forward.1} parent=1 // pred_region
      _
    $region17: #{critic_forward.1} parent=1 // pred_fallthru
      _
    // Predicated region
    $region18: #{critic_forward.1} parent=1 // pred_check
      _
    $region19: #{critic_forward.1} parent=1 // pred_check_branch
      %35 = sbr.rel (0) target = $region21
    $region20: #{critic_forward.1} parent=1 // pred_region
      _
    $region21: #{critic_forward.1} parent=1 // pred_fallthru
      _
    // Predicated region
    $region22: #{critic_forward.1} parent=1 // pred_check
      _
    $region23: #{critic_forward.1} parent=1 // pred_check_branch
      %37 = sbr.rel (0) target = $region25
    $region24: #{critic_forward.1} parent=1 // pred_region
      %s39 = ssub.s32 12288, 12288
      %40 = vsyncadd [#allocation5], %s39
      %s41 = sshll.u32 [#allocation4], 4
      %s42 = int_to_ptr.vmem [resolvable:$true] %s41
      %47 = dma.hbm_to_vmem [thread:$0]  %s5, 12288, %s42, [#allocation5], 192, 192, 12
    $region25: #{critic_forward.1} parent=1 // pred_fallthru
      _
    // Predicated region
    $region26: #{critic_forward.1} parent=1 // pred_check
      _
    $region27: #{critic_forward.1} parent=1 // pred_check_branch
      %49 = sbr.rel (0) target = $region29
    $region28: #{critic_forward.1} parent=1 // pred_region
      _
    $region29: #{critic_forward.1} parent=1 // pred_fallthru
      _
    // Predicated region
    $region30: #{critic_forward.1} parent=1 // pred_check
      _
    $region31: #{critic_forward.1} parent=1 // pred_check_branch
      %51 = sbr.rel (0) target = $region33
    $region32: #{critic_forward.1} parent=1 // pred_region
      %s53 = ssub.s32 3072, 3072
      %54 = vsyncadd [#allocation5], %s53
      %s55 = sshll.u32 [#allocation6], 4
      %s56 = int_to_ptr.vmem [resolvable:$true] %s55
      %61 = dma.hbm_to_vmem [thread:$0]  %s7, 3072, %s56, [#allocation5], 64, 64, 4
    $region33: #{critic_forward.1} parent=1 // pred_fallthru
      _
    // Predicated region
    $region34: #{critic_forward.1} parent=1 // pred_check
      _
    $region35: #{critic_forward.1} parent=1 // pred_check_branch
      %63 = sbr.rel (0) target = $region37
    $region36: #{critic_forward.1} parent=1 // pred_region
      _
    $region37: #{critic_forward.1} parent=1 // pred_fallthru
      _
    // Predicated region
    $region38: #{critic_forward.1} parent=1 // pred_check
      _
    $region39: #{critic_forward.1} parent=1 // pred_check_branch
      %65 = sbr.rel (0) target = $region41
    $region40: #{critic_forward.1} parent=1 // pred_region
      %66 = dma.done [#allocation3], 768
    $region41: #{critic_forward.1} parent=1 // pred_fallthru
      _
    // Predicated region
    $region42: #{critic_forward.1} parent=1 // pred_check
      _
    $region43: #{critic_forward.1} parent=1 // pred_check_branch
      %68 = sbr.rel (0) target = $region45
    $region44: #{critic_forward.1} parent=1 // pred_region
      %69 = dma.done [#allocation5], 12288
    $region45: #{critic_forward.1} parent=1 // pred_fallthru
      _
    // Predicated region
    $region46: #{critic_forward.1} parent=1 // pred_check
      _
    $region47: #{critic_forward.1} parent=1 // pred_check_branch
      %71 = sbr.rel (0) target = $region49
    $region48: #{critic_forward.1} parent=1 // pred_region
      %72 = dma.done [#allocation5], 3072
    $region49: #{critic_forward.1} parent=1 // pred_fallthru
      _
    %v74 = vld [vmem:[%s0] sm:$0xf]
    %v75 = vld [vmem:[#allocation2] sm:$0xff]
    %v76 = vld [vmem:[#allocation2 + $0x8] sm:$0xff]
    %v77 = vld [vmem:[#allocation2 + $0x10] sm:$0xff]
    %v78 = vld [vmem:[#allocation2 + $0x18] sm:$0xff]
    %v79 = vld [vmem:[#allocation2 + $0x20] sm:$0xff]
    %v80 = vld [vmem:[#allocation2 + $0x28] sm:$0xff]
    %v81 = vld [vmem:[%s1] sm:$0xf]
    %v82 = vld [vmem:[%s3] sm:$0xff]
    %v84 = vcombine.high %v82, %v82
    %v86 = vunpack.c.l.s4 1983009808
    %v87 = vunpack.c.0.s8 %v86
    %v88 = vlaneseq
    %v89 = vshrl.u32 %v88, 7
    %v90 = vsub.s32 %v87, %v89
    %v91 = vrot.slane %v82, %v90
    %v93 = vunpack.c.l.s4 1983009808
    %v94 = vunpack.c.0.s8 %v93
    %v95 = vlaneseq
    %v96 = vshrl.u32 %v95, 7
    %v97 = vsub.s32 %v94, %v96
    %v98 = vrot.slane %v84, %v97
    %v99 = vcombine.high %v91, %v91
    %v100 = vcombine.high %v98, %v98
    %vm101 = vcmask 31744
    %v103 = vsel %vm101, %v81, 0
    %vm105 = vcmask 1041408
    %v107 = vsel %vm105, %v91, 0
    %v110 = vsel %vm105, %v99, 0
    %v113 = vsel %vm105, %v98, 0
    %v116 = vsel %vm105, %v100, 0
    %118 = vmatprep.subr.bf16.mxu0 %v110
    %119 = vmatpush1.bf16.msra.mxu0 %v107
    %120 = vmatprep.subr.bf16.mxu0 0
    %121 = vmatpush1.bf16.msra.mxu0 0
    %122 = vmatprep.subr.bf16.mxu0 0
    %123 = vmatpush1.bf16.msra.mxu0 0
    %124 = vmatprep.subr.bf16.mxu0 0
    %125 = vmatpush1.bf16.msra.mxu0 0
    %126 = vmatprep.subr.bf16.mxu0 0
    %127 = vmatpush1.bf16.msra.mxu0 0
    %128 = vmatprep.subr.bf16.mxu0 0
    %129 = vmatpush1.bf16.msra.mxu0 0
    %130 = vmatprep.subr.bf16.mxu0 0
    %131 = vmatpush1.bf16.msra.mxu0 0
    %132 = vmatprep.subr.bf16.mxu0 0
    %133 = vmatpush1.bf16.msra.mxu0 0
    %134 = vmatprep.subr.bf16.mxu0 0
    %135 = vmatpush1.bf16.msra.mxu0 0
    %136 = vmatprep.subr.bf16.mxu0 0
    %137 = vmatpush1.bf16.msra.mxu0 0
    %138 = vmatprep.subr.bf16.mxu0 0
    %139 = vmatpush1.bf16.msra.mxu0 0
    %140 = vmatprep.subr.bf16.mxu0 0
    %141 = vmatpush1.bf16.msra.mxu0 0
    %142 = vmatprep.subr.bf16.mxu0 0
    %143 = vmatpush1.bf16.msra.mxu0 0
    %144 = vmatprep.subr.bf16.mxu0 0
    %145 = vmatpush1.bf16.msra.mxu0 0
    %146 = vmatprep.subr.bf16.mxu0 0
    %147 = vmatpush1.bf16.msra.mxu0 0
    %148 = vmatprep.subr.bf16.mxu0 0
    %149 = vmatpush1.bf16.msra.mxu0 0
    %150 = vmatprep.mubr.bf16.mxu0 0
    %151 = vmatmul.mubr.bf16.gmra.mrb[0].mxu0 %v103
    %v152 = vpop.f32.mrb[0].mxu0
    %v153 = vadd.f32 0.0, %v152
    %v154 = vpop.f32.mrb[0].mxu0
    %v155 = vadd.f32 0.0, %v154
    %v156 = vpop.f32.mrb[0].mxu0
    %v157 = vpop.f32.mrb[0].mxu0
    %158 = vdwg.mxu0
    %159 = vmatprep.subr.bf16.mxu0 %v116
    %160 = vmatpush1.bf16.msra.mxu0 %v113
    %161 = vmatprep.subr.bf16.mxu0 0
    %162 = vmatpush1.bf16.msra.mxu0 0
    %163 = vmatprep.subr.bf16.mxu0 0
    %164 = vmatpush1.bf16.msra.mxu0 0
    %165 = vmatprep.subr.bf16.mxu0 0
    %166 = vmatpush1.bf16.msra.mxu0 0
    %167 = vmatprep.subr.bf16.mxu0 0
    %168 = vmatpush1.bf16.msra.mxu0 0
    %169 = vmatprep.subr.bf16.mxu0 0
    %170 = vmatpush1.bf16.msra.mxu0 0
    %171 = vmatprep.subr.bf16.mxu0 0
    %172 = vmatpush1.bf16.msra.mxu0 0
    %173 = vmatprep.subr.bf16.mxu0 0
    %174 = vmatpush1.bf16.msra.mxu0 0
    %175 = vmatprep.subr.bf16.mxu0 0
    %176 = vmatpush1.bf16.msra.mxu0 0
    %177 = vmatprep.subr.bf16.mxu0 0
    %178 = vmatpush1.bf16.msra.mxu0 0
    %179 = vmatprep.subr.bf16.mxu0 0
    %180 = vmatpush1.bf16.msra.mxu0 0
    %181 = vmatprep.subr.bf16.mxu0 0
    %182 = vmatpush1.bf16.msra.mxu0 0
    %183 = vmatprep.subr.bf16.mxu0 0
    %184 = vmatpush1.bf16.msra.mxu0 0
    %185 = vmatprep.subr.bf16.mxu0 0
    %186 = vmatpush1.bf16.msra.mxu0 0
    %187 = vmatprep.subr.bf16.mxu0 0
    %188 = vmatpush1.bf16.msra.mxu0 0
    %189 = vmatprep.subr.bf16.mxu0 0
    %190 = vmatpush1.bf16.msra.mxu0 0
    %191 = vmatprep.mubr.bf16.mxu0 0
    %192 = vmatmul.mubr.bf16.gmra.mrb[0].mxu0 %v103
    %v193 = vpop.f32.mrb[0].mxu0
    %v194 = vadd.f32 0.0, %v193
    %v195 = vpop.f32.mrb[0].mxu0
    %v196 = vadd.f32 0.0, %v195
    %v197 = vpop.f32.mrb[0].mxu0
    %v198 = vpop.f32.mrb[0].mxu0
    %199 = vdwg.mxu0
    %v206 = vunpack.c.l.b16 %v75
    %v207 = vunpack.c.h.b16 %v75
    %v208 = vunpack.c.l.b16 %v76
    %v209 = vunpack.c.h.b16 %v76
    %v210 = vunpack.c.l.b16 %v77
    %v211 = vunpack.c.h.b16 %v77
    %v212 = vunpack.c.l.b16 %v78
    %v213 = vunpack.c.h.b16 %v78
    %v214 = vunpack.c.l.b16 %v79
    %v215 = vunpack.c.h.b16 %v79
    %v216 = vunpack.c.l.b16 %v80
    %v217 = vunpack.c.h.b16 %v80
    %v218 = vpack.c.b16 %v210, %v206
    %v219 = vpack.c.b16 %v211, %v207
    %v220 = vpack.c.b16 %v212, %v208
    %v221 = vpack.c.b16 %v213, %v209
    %v222 = vpack.c.b16 %v214, %v214
    %v223 = vpack.c.b16 %v215, %v215
    %v224 = vpack.c.b16 %v216, %v216
    %v225 = vpack.c.b16 %v217, %v217
    %vm230 = vcmask 195584
    %v232 = vsel %vm230, %v74, 0
    %vm234 = vcmask 1043456
    %v236 = vsel %vm234, %v222, 0
    %v239 = vsel %vm234, %v223, 0
    %v242 = vsel %vm234, %v224, 0
    %v245 = vsel %vm234, %v225, 0
    %247 = vmatprep.subr.bf16.mxu0 %v219
    %248 = vmatpush1.bf16.msra.mxu0 %v218
    %249 = vmatprep.subr.bf16.mxu0 %v239
    %250 = vmatpush1.bf16.msra.mxu0 %v236
    %251 = vmatprep.subr.bf16.mxu0 0
    %252 = vmatpush1.bf16.msra.mxu0 0
    %253 = vmatprep.subr.bf16.mxu0 0
    %254 = vmatpush1.bf16.msra.mxu0 0
    %255 = vmatprep.subr.bf16.mxu0 0
    %256 = vmatpush1.bf16.msra.mxu0 0
    %257 = vmatprep.subr.bf16.mxu0 0
    %258 = vmatpush1.bf16.msra.mxu0 0
    %259 = vmatprep.subr.bf16.mxu0 0
    %260 = vmatpush1.bf16.msra.mxu0 0
    %261 = vmatprep.subr.bf16.mxu0 0
    %262 = vmatpush1.bf16.msra.mxu0 0
    %263 = vmatprep.subr.bf16.mxu0 0
    %264 = vmatpush1.bf16.msra.mxu0 0
    %265 = vmatprep.subr.bf16.mxu0 0
    %266 = vmatpush1.bf16.msra.mxu0 0
    %267 = vmatprep.subr.bf16.mxu0 0
    %268 = vmatpush1.bf16.msra.mxu0 0
    %269 = vmatprep.subr.bf16.mxu0 0
    %270 = vmatpush1.bf16.msra.mxu0 0
    %271 = vmatprep.subr.bf16.mxu0 0
    %272 = vmatpush1.bf16.msra.mxu0 0
    %273 = vmatprep.subr.bf16.mxu0 0
    %274 = vmatpush1.bf16.msra.mxu0 0
    %275 = vmatprep.subr.bf16.mxu0 0
    %276 = vmatpush1.bf16.msra.mxu0 0
    %277 = vmatprep.subr.bf16.mxu0 0
    %278 = vmatpush1.bf16.msra.mxu0 0
    %279 = vmatprep.mubr.bf16.mxu0 0
    %280 = vmatmul.mubr.bf16.gmra.mrb[0].mxu0 %v232
    %v281 = vpop.f32.mrb[0].mxu0
    %v282 = vadd.f32 %v153, %v281
    %v283 = vpop.f32.mrb[0].mxu0
    %v284 = vadd.f32 %v155, %v283
    %v285 = vpop.f32.mrb[0].mxu0
    %v286 = vpop.f32.mrb[0].mxu0
    %287 = vdwg.mxu0
    %288 = vmatprep.subr.bf16.mxu0 %v221
    %289 = vmatpush1.bf16.msra.mxu0 %v220
    %290 = vmatprep.subr.bf16.mxu0 %v245
    %291 = vmatpush1.bf16.msra.mxu0 %v242
    %292 = vmatprep.subr.bf16.mxu0 0
    %293 = vmatpush1.bf16.msra.mxu0 0
    %294 = vmatprep.subr.bf16.mxu0 0
    %295 = vmatpush1.bf16.msra.mxu0 0
    %296 = vmatprep.subr.bf16.mxu0 0
    %297 = vmatpush1.bf16.msra.mxu0 0
    %298 = vmatprep.subr.bf16.mxu0 0
    %299 = vmatpush1.bf16.msra.mxu0 0
    %300 = vmatprep.subr.bf16.mxu0 0
    %301 = vmatpush1.bf16.msra.mxu0 0
    %302 = vmatprep.subr.bf16.mxu0 0
    %303 = vmatpush1.bf16.msra.mxu0 0
    %304 = vmatprep.subr.bf16.mxu0 0
    %305 = vmatpush1.bf16.msra.mxu0 0
    %306 = vmatprep.subr.bf16.mxu0 0
    %307 = vmatpush1.bf16.msra.mxu0 0
    %308 = vmatprep.subr.bf16.mxu0 0
    %309 = vmatpush1.bf16.msra.mxu0 0
    %310 = vmatprep.subr.bf16.mxu0 0
    %311 = vmatpush1.bf16.msra.mxu0 0
    %312 = vmatprep.subr.bf16.mxu0 0
    %313 = vmatpush1.bf16.msra.mxu0 0
    %314 = vmatprep.subr.bf16.mxu0 0
    %315 = vmatpush1.bf16.msra.mxu0 0
    %316 = vmatprep.subr.bf16.mxu0 0
    %317 = vmatpush1.bf16.msra.mxu0 0
    %318 = vmatprep.subr.bf16.mxu0 0
    %319 = vmatpush1.bf16.msra.mxu0 0
    %320 = vmatprep.mubr.bf16.mxu0 0
    %321 = vmatmul.mubr.bf16.gmra.mrb[0].mxu0 %v232
    %v322 = vpop.f32.mrb[0].mxu0
    %v323 = vadd.f32 %v194, %v322
    %v324 = vpop.f32.mrb[0].mxu0
    %v325 = vadd.f32 %v196, %v324
    %v326 = vpop.f32.mrb[0].mxu0
    %v327 = vpop.f32.mrb[0].mxu0
    %328 = vdwg.mxu0
    %v329 = vld [vmem:[%s4] sm:$0xf]
    %v331 = vlaneseq
    %v332 = vshrl.u32 %v331, 7
    %v333 = vsub.s32 0, %v332
    %v334 = vrot.slane %v329, %v333
    %v335 = vlaneseq
    %v336 = vshrl.u32 %v335, 7
    %v337 = vsub.s32 1, %v336
    %v338 = vrot.slane %v329, %v337
    %v339 = vlaneseq
    %v340 = vshrl.u32 %v339, 7
    %v341 = vsub.s32 2, %v340
    %v342 = vrot.slane %v329, %v341
    %v343 = vlaneseq
    %v344 = vshrl.u32 %v343, 7
    %v345 = vsub.s32 3, %v344
    %v346 = vrot.slane %v329, %v345
    %v351 = vadd.f32 %v282, %v334
    %v352 = vadd.f32 %v284, %v338
    %v353 = vadd.f32 %v323, %v342
    %v354 = vadd.f32 %v325, %v346
    %v355 = vmax.f32 %v351, 0.0
    %v356 = vmax.f32 %v352, 0.0
    %v357 = vmax.f32 %v353, 0.0
    %v358 = vmax.f32 %v354, 0.0
    %v359 = vpack.c.bf16 %v355, %v355
    %v360 = vpack.c.bf16 %v356, %v356
    %v361 = vpack.c.bf16 %v357, %v357
    %v362 = vpack.c.bf16 %v358, %v358
    %v363 = vld [vmem:[#allocation4] sm:$0xff]
    %v364 = vld [vmem:[#allocation4 + $0x8] sm:$0xf]
    %v365 = vld [vmem:[#allocation4 + $0xc] sm:$0xff]
    %v366 = vld [vmem:[#allocation4 + $0x14] sm:$0xf]
    %v367 = vld [vmem:[#allocation4 + $0x18] sm:$0xff]
    %v368 = vld [vmem:[#allocation4 + $0x20] sm:$0xf]
    %v369 = vld [vmem:[#allocation4 + $0x24] sm:$0xff]
    %v370 = vld [vmem:[#allocation4 + $0x2c] sm:$0xf]
    %v371 = vld [vmem:[#allocation4 + $0x30] sm:$0xff]
    %v372 = vld [vmem:[#allocation4 + $0x38] sm:$0xf]
    %v373 = vld [vmem:[#allocation4 + $0x3c] sm:$0xff]
    %v374 = vld [vmem:[#allocation4 + $0x44] sm:$0xf]
    %v375 = vld [vmem:[#allocation4 + $0x48] sm:$0xff]
    %v376 = vld [vmem:[#allocation4 + $0x50] sm:$0xf]
    %v377 = vld [vmem:[#allocation4 + $0x54] sm:$0xff]
    %v378 = vld [vmem:[#allocation4 + $0x5c] sm:$0xf]
    %v379 = vld [vmem:[#allocation4 + $0x60] sm:$0xff]
    %v380 = vld [vmem:[#allocation4 + $0x68] sm:$0xf]
    %v381 = vld [vmem:[#allocation4 + $0x6c] sm:$0xff]
    %v382 = vld [vmem:[#allocation4 + $0x74] sm:$0xf]
    %v383 = vld [vmem:[#allocation4 + $0x78] sm:$0xff]
    %v384 = vld [vmem:[#allocation4 + $0x80] sm:$0xf]
    %v385 = vld [vmem:[#allocation4 + $0x84] sm:$0xff]
    %v386 = vld [vmem:[#allocation4 + $0x8c] sm:$0xf]
    %v387 = vld [vmem:[#allocation4 + $0x90] sm:$0xff]
    %v388 = vld [vmem:[#allocation4 + $0x98] sm:$0xf]
    %v389 = vld [vmem:[#allocation4 + $0x9c] sm:$0xff]
    %v390 = vld [vmem:[#allocation4 + $0xa4] sm:$0xf]
    %v391 = vld [vmem:[#allocation4 + $0xa8] sm:$0xff]
    %v392 = vld [vmem:[#allocation4 + $0xb0] sm:$0xf]
    %v393 = vld [vmem:[#allocation4 + $0xb4] sm:$0xff]
    %v394 = vld [vmem:[#allocation4 + $0xbc] sm:$0xf]
    %v395 = vld [vmem:[#allocation4 + $0xc0] sm:$0xff]
    %v396 = vld [vmem:[#allocation4 + $0xc8] sm:$0xf]
    %v397 = vld [vmem:[#allocation4 + $0xcc] sm:$0xff]
    %v398 = vld [vmem:[#allocation4 + $0xd4] sm:$0xf]
    %v399 = vld [vmem:[#allocation4 + $0xd8] sm:$0xff]
    %v400 = vld [vmem:[#allocation4 + $0xe0] sm:$0xf]
    %v401 = vld [vmem:[#allocation4 + $0xe4] sm:$0xff]
    %v402 = vld [vmem:[#allocation4 + $0xec] sm:$0xf]
    %v403 = vld [vmem:[#allocation4 + $0xf0] sm:$0xff]
    %v404 = vld [vmem:[#allocation4 + $0xf8] sm:$0xf]
    %v405 = vld [vmem:[#allocation4 + $0xfc] sm:$0xff]
    %v406 = vld [vmem:[#allocation4 + $0x104] sm:$0xf]
    %v407 = vld [vmem:[#allocation4 + $0x108] sm:$0xff]
    %v408 = vld [vmem:[#allocation4 + $0x110] sm:$0xf]
    %v409 = vld [vmem:[#allocation4 + $0x114] sm:$0xff]
    %v410 = vld [vmem:[#allocation4 + $0x11c] sm:$0xf]
    %v411 = vld [vmem:[#allocation4 + $0x120] sm:$0xff]
    %v412 = vld [vmem:[#allocation4 + $0x128] sm:$0xf]
    %v413 = vld [vmem:[#allocation4 + $0x12c] sm:$0xff]
    %v414 = vld [vmem:[#allocation4 + $0x134] sm:$0xf]
    %v415 = vld [vmem:[#allocation4 + $0x138] sm:$0xff]
    %v416 = vld [vmem:[#allocation4 + $0x140] sm:$0xf]
    %v417 = vld [vmem:[#allocation4 + $0x144] sm:$0xff]
    %v418 = vld [vmem:[#allocation4 + $0x14c] sm:$0xf]
    %v419 = vld [vmem:[#allocation4 + $0x150] sm:$0xff]
    %v420 = vld [vmem:[#allocation4 + $0x158] sm:$0xf]
    %v421 = vld [vmem:[#allocation4 + $0x15c] sm:$0xff]
    %v422 = vld [vmem:[#allocation4 + $0x164] sm:$0xf]
    %v423 = vld [vmem:[#allocation4 + $0x168] sm:$0xff]
    %v424 = vld [vmem:[#allocation4 + $0x170] sm:$0xf]
    %v425 = vld [vmem:[#allocation4 + $0x174] sm:$0xff]
    %v426 = vld [vmem:[#allocation4 + $0x17c] sm:$0xf]
    %v427 = vld [vmem:[#allocation4 + $0x180] sm:$0xff]
    %v428 = vld [vmem:[#allocation4 + $0x188] sm:$0xf]
    %v429 = vld [vmem:[#allocation4 + $0x18c] sm:$0xff]
    %v430 = vld [vmem:[#allocation4 + $0x194] sm:$0xf]
    %v431 = vld [vmem:[#allocation4 + $0x198] sm:$0xff]
    %v432 = vld [vmem:[#allocation4 + $0x1a0] sm:$0xf]
    %v433 = vld [vmem:[#allocation4 + $0x1a4] sm:$0xff]
    %v434 = vld [vmem:[#allocation4 + $0x1ac] sm:$0xf]
    %v435 = vld [vmem:[#allocation4 + $0x1b0] sm:$0xff]
    %v436 = vld [vmem:[#allocation4 + $0x1b8] sm:$0xf]
    %v437 = vld [vmem:[#allocation4 + $0x1bc] sm:$0xff]
    %v438 = vld [vmem:[#allocation4 + $0x1c4] sm:$0xf]
    %v439 = vld [vmem:[#allocation4 + $0x1c8] sm:$0xff]
    %v440 = vld [vmem:[#allocation4 + $0x1d0] sm:$0xf]
    %v441 = vld [vmem:[#allocation4 + $0x1d4] sm:$0xff]
    %v442 = vld [vmem:[#allocation4 + $0x1dc] sm:$0xf]
    %v443 = vld [vmem:[#allocation4 + $0x1e0] sm:$0xff]
    %v444 = vld [vmem:[#allocation4 + $0x1e8] sm:$0xf]
    %v445 = vld [vmem:[#allocation4 + $0x1ec] sm:$0xff]
    %v446 = vld [vmem:[#allocation4 + $0x1f4] sm:$0xf]
    %v447 = vld [vmem:[#allocation4 + $0x1f8] sm:$0xff]
    %v448 = vld [vmem:[#allocation4 + $0x200] sm:$0xf]
    %v449 = vld [vmem:[#allocation4 + $0x204] sm:$0xff]
    %v450 = vld [vmem:[#allocation4 + $0x20c] sm:$0xf]
    %v451 = vld [vmem:[#allocation4 + $0x210] sm:$0xff]
    %v452 = vld [vmem:[#allocation4 + $0x218] sm:$0xf]
    %v453 = vld [vmem:[#allocation4 + $0x21c] sm:$0xff]
    %v454 = vld [vmem:[#allocation4 + $0x224] sm:$0xf]
    %v455 = vld [vmem:[#allocation4 + $0x228] sm:$0xff]
    %v456 = vld [vmem:[#allocation4 + $0x230] sm:$0xf]
    %v457 = vld [vmem:[#allocation4 + $0x234] sm:$0xff]
    %v458 = vld [vmem:[#allocation4 + $0x23c] sm:$0xf]
    %v459 = vld [vmem:[#allocation4 + $0x240] sm:$0xff]
    %v460 = vld [vmem:[#allocation4 + $0x248] sm:$0xf]
    %v461 = vld [vmem:[#allocation4 + $0x24c] sm:$0xff]
    %v462 = vld [vmem:[#allocation4 + $0x254] sm:$0xf]
    %v463 = vld [vmem:[#allocation4 + $0x258] sm:$0xff]
    %v464 = vld [vmem:[#allocation4 + $0x260] sm:$0xf]
    %v465 = vld [vmem:[#allocation4 + $0x264] sm:$0xff]
    %v466 = vld [vmem:[#allocation4 + $0x26c] sm:$0xf]
    %v467 = vld [vmem:[#allocation4 + $0x270] sm:$0xff]
    %v468 = vld [vmem:[#allocation4 + $0x278] sm:$0xf]
    %v469 = vld [vmem:[#allocation4 + $0x27c] sm:$0xff]
    %v470 = vld [vmem:[#allocation4 + $0x284] sm:$0xf]
    %v471 = vld [vmem:[#allocation4 + $0x288] sm:$0xff]
    %v472 = vld [vmem:[#allocation4 + $0x290] sm:$0xf]
    %v473 = vld [vmem:[#allocation4 + $0x294] sm:$0xff]
    %v474 = vld [vmem:[#allocation4 + $0x29c] sm:$0xf]
    %v475 = vld [vmem:[#allocation4 + $0x2a0] sm:$0xff]
    %v476 = vld [vmem:[#allocation4 + $0x2a8] sm:$0xf]
    %v477 = vld [vmem:[#allocation4 + $0x2ac] sm:$0xff]
    %v478 = vld [vmem:[#allocation4 + $0x2b4] sm:$0xf]
    %v479 = vld [vmem:[#allocation4 + $0x2b8] sm:$0xff]
    %v480 = vld [vmem:[#allocation4 + $0x2c0] sm:$0xf]
    %v481 = vld [vmem:[#allocation4 + $0x2c4] sm:$0xff]
    %v482 = vld [vmem:[#allocation4 + $0x2cc] sm:$0xf]
    %v483 = vld [vmem:[#allocation4 + $0x2d0] sm:$0xff]
    %v484 = vld [vmem:[#allocation4 + $0x2d8] sm:$0xf]
    %v485 = vld [vmem:[#allocation4 + $0x2dc] sm:$0xff]
    %v486 = vld [vmem:[#allocation4 + $0x2e4] sm:$0xf]
    %v487 = vld [vmem:[#allocation4 + $0x2e8] sm:$0xff]
    %v488 = vld [vmem:[#allocation4 + $0x2f0] sm:$0xf]
    %v489 = vld [vmem:[#allocation4 + $0x2f4] sm:$0xff]
    %v490 = vld [vmem:[#allocation4 + $0x2fc] sm:$0xf]
    %v491 = vld [vmem:[%s6] sm:$0x7]
    %v493 = vlaneseq
    %v494 = vshrl.u32 %v493, 7
    %v495 = vsub.s32 0, %v494
    %v496 = vrot.slane %v491, %v495
    %v497 = vlaneseq
    %v498 = vshrl.u32 %v497, 7
    %v499 = vsub.s32 1, %v498
    %v500 = vrot.slane %v491, %v499
    %v501 = vlaneseq
    %v502 = vshrl.u32 %v501, 7
    %v503 = vsub.s32 2, %v502
    %v504 = vrot.slane %v491, %v503
    %v636 = vunpack.c.l.b16 %v363
    %v637 = vunpack.c.h.b16 %v363
    %v638 = vunpack.c.l.b16 %v364
    %v639 = vunpack.c.l.b16 %v365
    %v640 = vunpack.c.h.b16 %v365
    %v641 = vunpack.c.l.b16 %v366
    %v642 = vunpack.c.l.b16 %v367
    %v643 = vunpack.c.h.b16 %v367
    %v644 = vunpack.c.l.b16 %v368
    %v645 = vunpack.c.l.b16 %v369
    %v646 = vunpack.c.h.b16 %v369
    %v647 = vunpack.c.l.b16 %v370
    %v648 = vunpack.c.l.b16 %v371
    %v649 = vunpack.c.h.b16 %v371
    %v650 = vunpack.c.l.b16 %v372
    %v651 = vunpack.c.l.b16 %v373
    %v652 = vunpack.c.h.b16 %v373
    %v653 = vunpack.c.l.b16 %v374
    %v654 = vunpack.c.l.b16 %v375
    %v655 = vunpack.c.h.b16 %v375
    %v656 = vunpack.c.l.b16 %v376
    %v657 = vunpack.c.l.b16 %v377
    %v658 = vunpack.c.h.b16 %v377
    %v659 = vunpack.c.l.b16 %v378
    %v660 = vunpack.c.l.b16 %v379
    %v661 = vunpack.c.h.b16 %v379
    %v662 = vunpack.c.l.b16 %v380
    %v663 = vunpack.c.l.b16 %v381
    %v664 = vunpack.c.h.b16 %v381
    %v665 = vunpack.c.l.b16 %v382
    %v666 = vunpack.c.l.b16 %v383
    %v667 = vunpack.c.h.b16 %v383
    %v668 = vunpack.c.l.b16 %v384
    %v669 = vunpack.c.l.b16 %v385
    %v670 = vunpack.c.h.b16 %v385
    %v671 = vunpack.c.l.b16 %v386
    %v672 = vunpack.c.l.b16 %v387
    %v673 = vunpack.c.h.b16 %v387
    %v674 = vunpack.c.l.b16 %v388
    %v675 = vunpack.c.l.b16 %v389
    %v676 = vunpack.c.h.b16 %v389
    %v677 = vunpack.c.l.b16 %v390
    %v678 = vunpack.c.l.b16 %v391
    %v679 = vunpack.c.h.b16 %v391
    %v680 = vunpack.c.l.b16 %v392
    %v681 = vunpack.c.l.b16 %v393
    %v682 = vunpack.c.h.b16 %v393
    %v683 = vunpack.c.l.b16 %v394
    %v684 = vunpack.c.l.b16 %v395
    %v685 = vunpack.c.h.b16 %v395
    %v686 = vunpack.c.l.b16 %v396
    %v687 = vunpack.c.l.b16 %v397
    %v688 = vunpack.c.h.b16 %v397
    %v689 = vunpack.c.l.b16 %v398
    %v690 = vunpack.c.l.b16 %v399
    %v691 = vunpack.c.h.b16 %v399
    %v692 = vunpack.c.l.b16 %v400
    %v693 = vunpack.c.l.b16 %v401
    %v694 = vunpack.c.h.b16 %v401
    %v695 = vunpack.c.l.b16 %v402
    %v696 = vunpack.c.l.b16 %v403
    %v697 = vunpack.c.h.b16 %v403
    %v698 = vunpack.c.l.b16 %v404
    %v699 = vunpack.c.l.b16 %v405
    %v700 = vunpack.c.h.b16 %v405
    %v701 = vunpack.c.l.b16 %v406
    %v702 = vunpack.c.l.b16 %v407
    %v703 = vunpack.c.h.b16 %v407
    %v704 = vunpack.c.l.b16 %v408
    %v705 = vunpack.c.l.b16 %v409
    %v706 = vunpack.c.h.b16 %v409
    %v707 = vunpack.c.l.b16 %v410
    %v708 = vunpack.c.l.b16 %v411
    %v709 = vunpack.c.h.b16 %v411
    %v710 = vunpack.c.l.b16 %v412
    %v711 = vunpack.c.l.b16 %v413
    %v712 = vunpack.c.h.b16 %v413
    %v713 = vunpack.c.l.b16 %v414
    %v714 = vunpack.c.l.b16 %v415
    %v715 = vunpack.c.h.b16 %v415
    %v716 = vunpack.c.l.b16 %v416
    %v717 = vunpack.c.l.b16 %v417
    %v718 = vunpack.c.h.b16 %v417
    %v719 = vunpack.c.l.b16 %v418
    %v720 = vunpack.c.l.b16 %v419
    %v721 = vunpack.c.h.b16 %v419
    %v722 = vunpack.c.l.b16 %v420
    %v723 = vunpack.c.l.b16 %v421
    %v724 = vunpack.c.h.b16 %v421
    %v725 = vunpack.c.l.b16 %v422
    %v726 = vunpack.c.l.b16 %v423
    %v727 = vunpack.c.h.b16 %v423
    %v728 = vunpack.c.l.b16 %v424
    %v729 = vunpack.c.l.b16 %v425
    %v730 = vunpack.c.h.b16 %v425
    %v731 = vunpack.c.l.b16 %v426
    %v732 = vunpack.c.l.b16 %v427
    %v733 = vunpack.c.h.b16 %v427
    %v734 = vunpack.c.l.b16 %v428
    %v735 = vunpack.c.l.b16 %v429
    %v736 = vunpack.c.h.b16 %v429
    %v737 = vunpack.c.l.b16 %v430
    %v738 = vunpack.c.l.b16 %v431
    %v739 = vunpack.c.h.b16 %v431
    %v740 = vunpack.c.l.b16 %v432
    %v741 = vunpack.c.l.b16 %v433
    %v742 = vunpack.c.h.b16 %v433
    %v743 = vunpack.c.l.b16 %v434
    %v744 = vunpack.c.l.b16 %v435
    %v745 = vunpack.c.h.b16 %v435
    %v746 = vunpack.c.l.b16 %v436
    %v747 = vunpack.c.l.b16 %v437
    %v748 = vunpack.c.h.b16 %v437
    %v749 = vunpack.c.l.b16 %v438
    %v750 = vunpack.c.l.b16 %v439
    %v751 = vunpack.c.h.b16 %v439
    %v752 = vunpack.c.l.b16 %v440
    %v753 = vunpack.c.l.b16 %v441
    %v754 = vunpack.c.h.b16 %v441
    %v755 = vunpack.c.l.b16 %v442
    %v756 = vunpack.c.l.b16 %v443
    %v757 = vunpack.c.h.b16 %v443
    %v758 = vunpack.c.l.b16 %v444
    %v759 = vunpack.c.l.b16 %v445
    %v760 = vunpack.c.h.b16 %v445
    %v761 = vunpack.c.l.b16 %v446
    %v762 = vunpack.c.l.b16 %v447
    %v763 = vunpack.c.h.b16 %v447
    %v764 = vunpack.c.l.b16 %v448
    %v765 = vunpack.c.l.b16 %v449
    %v766 = vunpack.c.h.b16 %v449
    %v767 = vunpack.c.l.b16 %v450
    %v768 = vunpack.c.l.b16 %v451
    %v769 = vunpack.c.h.b16 %v451
    %v770 = vunpack.c.l.b16 %v452
    %v771 = vunpack.c.l.b16 %v453
    %v772 = vunpack.c.h.b16 %v453
    %v773 = vunpack.c.l.b16 %v454
    %v774 = vunpack.c.l.b16 %v455
    %v775 = vunpack.c.h.b16 %v455
    %v776 = vunpack.c.l.b16 %v456
    %v777 = vunpack.c.l.b16 %v457
    %v778 = vunpack.c.h.b16 %v457
    %v779 = vunpack.c.l.b16 %v458
    %v780 = vunpack.c.l.b16 %v459
    %v781 = vunpack.c.h.b16 %v459
    %v782 = vunpack.c.l.b16 %v460
    %v783 = vunpack.c.l.b16 %v461
    %v784 = vunpack.c.h.b16 %v461
    %v785 = vunpack.c.l.b16 %v462
    %v786 = vunpack.c.l.b16 %v463
    %v787 = vunpack.c.h.b16 %v463
    %v788 = vunpack.c.l.b16 %v464
    %v789 = vunpack.c.l.b16 %v465
    %v790 = vunpack.c.h.b16 %v465
    %v791 = vunpack.c.l.b16 %v466
    %v792 = vunpack.c.l.b16 %v467
    %v793 = vunpack.c.h.b16 %v467
    %v794 = vunpack.c.l.b16 %v468
    %v795 = vunpack.c.l.b16 %v469
    %v796 = vunpack.c.h.b16 %v469
    %v797 = vunpack.c.l.b16 %v470
    %v798 = vunpack.c.l.b16 %v471
    %v799 = vunpack.c.h.b16 %v471
    %v800 = vunpack.c.l.b16 %v472
    %v801 = vunpack.c.l.b16 %v473
    %v802 = vunpack.c.h.b16 %v473
    %v803 = vunpack.c.l.b16 %v474
    %v804 = vunpack.c.l.b16 %v475
    %v805 = vunpack.c.h.b16 %v475
    %v806 = vunpack.c.l.b16 %v476
    %v807 = vunpack.c.l.b16 %v477
    %v808 = vunpack.c.h.b16 %v477
    %v809 = vunpack.c.l.b16 %v478
    %v810 = vunpack.c.l.b16 %v479
    %v811 = vunpack.c.h.b16 %v479
    %v812 = vunpack.c.l.b16 %v480
    %v813 = vunpack.c.l.b16 %v481
    %v814 = vunpack.c.h.b16 %v481
    %v815 = vunpack.c.l.b16 %v482
    %v816 = vunpack.c.l.b16 %v483
    %v817 = vunpack.c.h.b16 %v483
    %v818 = vunpack.c.l.b16 %v484
    %v819 = vunpack.c.l.b16 %v485
    %v820 = vunpack.c.h.b16 %v485
    %v821 = vunpack.c.l.b16 %v486
    %v822 = vunpack.c.l.b16 %v487
    %v823 = vunpack.c.h.b16 %v487
    %v824 = vunpack.c.l.b16 %v488
    %v825 = vunpack.c.l.b16 %v489
    %v826 = vunpack.c.h.b16 %v489
    %v827 = vunpack.c.l.b16 %v490
    %v828 = vpack.c.b16 %v639, %v636
    %v829 = vpack.c.b16 %v640, %v637
    %v830 = vpack.c.b16 %v641, %v638
    %v831 = vpack.c.b16 %v645, %v642
    %v832 = vpack.c.b16 %v646, %v643
    %v833 = vpack.c.b16 %v647, %v644
    %v834 = vpack.c.b16 %v651, %v648
    %v835 = vpack.c.b16 %v652, %v649
    %v836 = vpack.c.b16 %v653, %v650
    %v837 = vpack.c.b16 %v657, %v654
    %v838 = vpack.c.b16 %v658, %v655
    %v839 = vpack.c.b16 %v659, %v656
    %v840 = vpack.c.b16 %v663, %v660
    %v841 = vpack.c.b16 %v664, %v661
    %v842 = vpack.c.b16 %v665, %v662
    %v843 = vpack.c.b16 %v669, %v666
    %v844 = vpack.c.b16 %v670, %v667
    %v845 = vpack.c.b16 %v671, %v668
    %v846 = vpack.c.b16 %v675, %v672
    %v847 = vpack.c.b16 %v676, %v673
    %v848 = vpack.c.b16 %v677, %v674
    %v849 = vpack.c.b16 %v681, %v678
    %v850 = vpack.c.b16 %v682, %v679
    %v851 = vpack.c.b16 %v683, %v680
    %v852 = vpack.c.b16 %v687, %v684
    %v853 = vpack.c.b16 %v688, %v685
    %v854 = vpack.c.b16 %v689, %v686
    %v855 = vpack.c.b16 %v693, %v690
    %v856 = vpack.c.b16 %v694, %v691
    %v857 = vpack.c.b16 %v695, %v692
    %v858 = vpack.c.b16 %v699, %v696
    %v859 = vpack.c.b16 %v700, %v697
    %v860 = vpack.c.b16 %v701, %v698
    %v861 = vpack.c.b16 %v705, %v702
    %v862 = vpack.c.b16 %v706, %v703
    %v863 = vpack.c.b16 %v707, %v704
    %v864 = vpack.c.b16 %v711, %v708
    %v865 = vpack.c.b16 %v712, %v709
    %v866 = vpack.c.b16 %v713, %v710
    %v867 = vpack.c.b16 %v717, %v714
    %v868 = vpack.c.b16 %v718, %v715
    %v869 = vpack.c.b16 %v719, %v716
    %v870 = vpack.c.b16 %v723, %v720
    %v871 = vpack.c.b16 %v724, %v721
    %v872 = vpack.c.b16 %v725, %v722
    %v873 = vpack.c.b16 %v729, %v726
    %v874 = vpack.c.b16 %v730, %v727
    %v875 = vpack.c.b16 %v731, %v728
    %v876 = vpack.c.b16 %v735, %v732
    %v877 = vpack.c.b16 %v736, %v733
    %v878 = vpack.c.b16 %v737, %v734
    %v879 = vpack.c.b16 %v741, %v738
    %v880 = vpack.c.b16 %v742, %v739
    %v881 = vpack.c.b16 %v743, %v740
    %v882 = vpack.c.b16 %v747, %v744
    %v883 = vpack.c.b16 %v748, %v745
    %v884 = vpack.c.b16 %v749, %v746
    %v885 = vpack.c.b16 %v753, %v750
    %v886 = vpack.c.b16 %v754, %v751
    %v887 = vpack.c.b16 %v755, %v752
    %v888 = vpack.c.b16 %v759, %v756
    %v889 = vpack.c.b16 %v760, %v757
    %v890 = vpack.c.b16 %v761, %v758
    %v891 = vpack.c.b16 %v765, %v762
    %v892 = vpack.c.b16 %v766, %v763
    %v893 = vpack.c.b16 %v767, %v764
    %v894 = vpack.c.b16 %v771, %v768
    %v895 = vpack.c.b16 %v772, %v769
    %v896 = vpack.c.b16 %v773, %v770
    %v897 = vpack.c.b16 %v777, %v774
    %v898 = vpack.c.b16 %v778, %v775
    %v899 = vpack.c.b16 %v779, %v776
    %v900 = vpack.c.b16 %v783, %v780
    %v901 = vpack.c.b16 %v784, %v781
    %v902 = vpack.c.b16 %v785, %v782
    %v903 = vpack.c.b16 %v789, %v786
    %v904 = vpack.c.b16 %v790, %v787
    %v905 = vpack.c.b16 %v791, %v788
    %v906 = vpack.c.b16 %v795, %v792
    %v907 = vpack.c.b16 %v796, %v793
    %v908 = vpack.c.b16 %v797, %v794
    %v909 = vpack.c.b16 %v801, %v798
    %v910 = vpack.c.b16 %v802, %v799
    %v911 = vpack.c.b16 %v803, %v800
    %v912 = vpack.c.b16 %v807, %v804
    %v913 = vpack.c.b16 %v808, %v805
    %v914 = vpack.c.b16 %v809, %v806
    %v915 = vpack.c.b16 %v813, %v810
    %v916 = vpack.c.b16 %v814, %v811
    %v917 = vpack.c.b16 %v815, %v812
    %v918 = vpack.c.b16 %v819, %v816
    %v919 = vpack.c.b16 %v820, %v817
    %v920 = vpack.c.b16 %v821, %v818
    %v921 = vpack.c.b16 %v825, %v822
    %v922 = vpack.c.b16 %v826, %v823
    %v923 = vpack.c.b16 %v827, %v824
    %1020 = vmatprep.subr.bf16.mxu0 %v829
    %1021 = vmatpush1.bf16.msra.mxu0 %v828
    %1022 = vmatprep.subr.bf16.mxu0 %v832
    %1023 = vmatpush1.bf16.msra.mxu0 %v831
    %1024 = vmatprep.subr.bf16.mxu0 %v835
    %1025 = vmatpush1.bf16.msra.mxu0 %v834
    %1026 = vmatprep.subr.bf16.mxu0 %v838
    %1027 = vmatpush1.bf16.msra.mxu0 %v837
    %1028 = vmatprep.subr.bf16.mxu0 %v841
    %1029 = vmatpush1.bf16.msra.mxu0 %v840
    %1030 = vmatprep.subr.bf16.mxu0 %v844
    %1031 = vmatpush1.bf16.msra.mxu0 %v843
    %1032 = vmatprep.subr.bf16.mxu0 %v847
    %1033 = vmatpush1.bf16.msra.mxu0 %v846
    %1034 = vmatprep.subr.bf16.mxu0 %v850
    %1035 = vmatpush1.bf16.msra.mxu0 %v849
    %1036 = vmatprep.subr.bf16.mxu0 %v853
    %1037 = vmatpush1.bf16.msra.mxu0 %v852
    %1038 = vmatprep.subr.bf16.mxu0 %v856
    %1039 = vmatpush1.bf16.msra.mxu0 %v855
    %1040 = vmatprep.subr.bf16.mxu0 %v859
    %1041 = vmatpush1.bf16.msra.mxu0 %v858
    %1042 = vmatprep.subr.bf16.mxu0 %v862
    %1043 = vmatpush1.bf16.msra.mxu0 %v861
    %1044 = vmatprep.subr.bf16.mxu0 %v865
    %1045 = vmatpush1.bf16.msra.mxu0 %v864
    %1046 = vmatprep.subr.bf16.mxu0 %v868
    %1047 = vmatpush1.bf16.msra.mxu0 %v867
    %1048 = vmatprep.subr.bf16.mxu0 %v871
    %1049 = vmatpush1.bf16.msra.mxu0 %v870
    %1050 = vmatprep.subr.bf16.mxu0 %v874
    %1051 = vmatpush1.bf16.msra.mxu0 %v873
    %1052 = vmatprep.mubr.bf16.mxu0 %v360
    %1053 = vmatmul.mubr.bf16.gmra.mrb[0].mxu0 %v359
    %v1054 = vpop.f32.mrb[0].mxu0
    %v1055 = vadd.f32 %v496, %v1054
    %v1056 = vpop.f32.mrb[0].mxu0
    %v1057 = vadd.f32 %v500, %v1056
    %v1058 = vpop.f32.mrb[0].mxu0
    %v1059 = vpop.f32.mrb[0].mxu0
    %1060 = vdwg.mxu0
    %1061 = vmatprep.subr.bf16.mxu0 %v877
    %1062 = vmatpush1.bf16.msra.mxu0 %v876
    %1063 = vmatprep.subr.bf16.mxu0 %v880
    %1064 = vmatpush1.bf16.msra.mxu0 %v879
    %1065 = vmatprep.subr.bf16.mxu0 %v883
    %1066 = vmatpush1.bf16.msra.mxu0 %v882
    %1067 = vmatprep.subr.bf16.mxu0 %v886
    %1068 = vmatpush1.bf16.msra.mxu0 %v885
    %1069 = vmatprep.subr.bf16.mxu0 %v889
    %1070 = vmatpush1.bf16.msra.mxu0 %v888
    %1071 = vmatprep.subr.bf16.mxu0 %v892
    %1072 = vmatpush1.bf16.msra.mxu0 %v891
    %1073 = vmatprep.subr.bf16.mxu0 %v895
    %1074 = vmatpush1.bf16.msra.mxu0 %v894
    %1075 = vmatprep.subr.bf16.mxu0 %v898
    %1076 = vmatpush1.bf16.msra.mxu0 %v897
    %1077 = vmatprep.subr.bf16.mxu0 %v901
    %1078 = vmatpush1.bf16.msra.mxu0 %v900
    %1079 = vmatprep.subr.bf16.mxu0 %v904
    %1080 = vmatpush1.bf16.msra.mxu0 %v903
    %1081 = vmatprep.subr.bf16.mxu0 %v907
    %1082 = vmatpush1.bf16.msra.mxu0 %v906
    %1083 = vmatprep.subr.bf16.mxu0 %v910
    %1084 = vmatpush1.bf16.msra.mxu0 %v909
    %1085 = vmatprep.subr.bf16.mxu0 %v913
    %1086 = vmatpush1.bf16.msra.mxu0 %v912
    %1087 = vmatprep.subr.bf16.mxu0 %v916
    %1088 = vmatpush1.bf16.msra.mxu0 %v915
    %1089 = vmatprep.subr.bf16.mxu0 %v919
    %1090 = vmatpush1.bf16.msra.mxu0 %v918
    %1091 = vmatprep.subr.bf16.mxu0 %v922
    %1092 = vmatpush1.bf16.msra.mxu0 %v921
    %1093 = vmatprep.mubr.bf16.mxu0 %v362
    %1094 = vmatmul.mubr.bf16.gmra.mrb[0].mxu0 %v361
    %v1095 = vpop.f32.mrb[0].mxu0
    %v1096 = vadd.f32 %v1055, %v1095
    %v1097 = vpop.f32.mrb[0].mxu0
    %v1098 = vadd.f32 %v1057, %v1097
    %v1099 = vpop.f32.mrb[0].mxu0
    %v1100 = vpop.f32.mrb[0].mxu0
    %1101 = vdwg.mxu0
    %1102 = vmatprep.subr.bf16.mxu0 0
    %1103 = vmatpush1.bf16.msra.mxu0 %v830
    %1104 = vmatprep.subr.bf16.mxu0 0
    %1105 = vmatpush1.bf16.msra.mxu0 %v833
    %1106 = vmatprep.subr.bf16.mxu0 0
    %1107 = vmatpush1.bf16.msra.mxu0 %v836
    %1108 = vmatprep.subr.bf16.mxu0 0
    %1109 = vmatpush1.bf16.msra.mxu0 %v839
    %1110 = vmatprep.subr.bf16.mxu0 0
    %1111 = vmatpush1.bf16.msra.mxu0 %v842
    %1112 = vmatprep.subr.bf16.mxu0 0
    %1113 = vmatpush1.bf16.msra.mxu0 %v845
    %1114 = vmatprep.subr.bf16.mxu0 0
    %1115 = vmatpush1.bf16.msra.mxu0 %v848
    %1116 = vmatprep.subr.bf16.mxu0 0
    %1117 = vmatpush1.bf16.msra.mxu0 %v851
    %1118 = vmatprep.subr.bf16.mxu0 0
    %1119 = vmatpush1.bf16.msra.mxu0 %v854
    %1120 = vmatprep.subr.bf16.mxu0 0
    %1121 = vmatpush1.bf16.msra.mxu0 %v857
    %1122 = vmatprep.subr.bf16.mxu0 0
    %1123 = vmatpush1.bf16.msra.mxu0 %v860
    %1124 = vmatprep.subr.bf16.mxu0 0
    %1125 = vmatpush1.bf16.msra.mxu0 %v863
    %1126 = vmatprep.subr.bf16.mxu0 0
    %1127 = vmatpush1.bf16.msra.mxu0 %v866
    %1128 = vmatprep.subr.bf16.mxu0 0
    %1129 = vmatpush1.bf16.msra.mxu0 %v869
    %1130 = vmatprep.subr.bf16.mxu0 0
    %1131 = vmatpush1.bf16.msra.mxu0 %v872
    %1132 = vmatprep.subr.bf16.mxu0 0
    %1133 = vmatpush1.bf16.msra.mxu0 %v875
    %1134 = vmatprep.mubr.bf16.mxu0 %v360
    %1135 = vmatmul.mubr.bf16.gmra.mrb[0].mxu0 %v359
    %v1136 = vpop.f32.mrb[0].mxu0
    %v1137 = vadd.f32 %v504, %v1136
    %v1138 = vpop.f32.mrb[0].mxu0
    %v1139 = vpop.f32.mrb[0].mxu0
    %v1140 = vpop.f32.mrb[0].mxu0
    %1141 = vdwg.mxu0
    %1142 = vmatprep.subr.bf16.mxu0 0
    %1143 = vmatpush1.bf16.msra.mxu0 %v878
    %1144 = vmatprep.subr.bf16.mxu0 0
    %1145 = vmatpush1.bf16.msra.mxu0 %v881
    %1146 = vmatprep.subr.bf16.mxu0 0
    %1147 = vmatpush1.bf16.msra.mxu0 %v884
    %1148 = vmatprep.subr.bf16.mxu0 0
    %1149 = vmatpush1.bf16.msra.mxu0 %v887
    %1150 = vmatprep.subr.bf16.mxu0 0
    %1151 = vmatpush1.bf16.msra.mxu0 %v890
    %1152 = vmatprep.subr.bf16.mxu0 0
    %1153 = vmatpush1.bf16.msra.mxu0 %v893
    %1154 = vmatprep.subr.bf16.mxu0 0
    %1155 = vmatpush1.bf16.msra.mxu0 %v896
    %1156 = vmatprep.subr.bf16.mxu0 0
    %1157 = vmatpush1.bf16.msra.mxu0 %v899
    %1158 = vmatprep.subr.bf16.mxu0 0
    %1159 = vmatpush1.bf16.msra.mxu0 %v902
    %1160 = vmatprep.subr.bf16.mxu0 0
    %1161 = vmatpush1.bf16.msra.mxu0 %v905
    %1162 = vmatprep.subr.bf16.mxu0 0
    %1163 = vmatpush1.bf16.msra.mxu0 %v908
    %1164 = vmatprep.subr.bf16.mxu0 0
    %1165 = vmatpush1.bf16.msra.mxu0 %v911
    %1166 = vmatprep.subr.bf16.mxu0 0
    %1167 = vmatpush1.bf16.msra.mxu0 %v914
    %1168 = vmatprep.subr.bf16.mxu0 0
    %1169 = vmatpush1.bf16.msra.mxu0 %v917
    %1170 = vmatprep.subr.bf16.mxu0 0
    %1171 = vmatpush1.bf16.msra.mxu0 %v920
    %1172 = vmatprep.subr.bf16.mxu0 0
    %1173 = vmatpush1.bf16.msra.mxu0 %v923
    %1174 = vmatprep.mubr.bf16.mxu0 %v362
    %1175 = vmatmul.mubr.bf16.gmra.mrb[0].mxu0 %v361
    %v1176 = vpop.f32.mrb[0].mxu0
    %v1177 = vadd.f32 %v1137, %v1176
    %v1178 = vpop.f32.mrb[0].mxu0
    %v1179 = vpop.f32.mrb[0].mxu0
    %v1180 = vpop.f32.mrb[0].mxu0
    %1181 = vdwg.mxu0
    %v1182 = vmax.f32 %v1096, 0.0
    %v1183 = vmax.f32 %v1098, 0.0
    %v1184 = vmax.f32 %v1177, 0.0
    %v1185 = vpack.c.bf16 %v1182, %v1182
    %v1186 = vpack.c.bf16 %v1183, %v1183
    %v1187 = vpack.c.bf16 %v1184, %v1184
    %v1188 = vld [vmem:[#allocation6] sm:$0xf]
    %v1189 = vld [vmem:[#allocation6 + $0x4] sm:$0xf]
    %v1190 = vld [vmem:[#allocation6 + $0x8] sm:$0xf]
    %v1191 = vld [vmem:[#allocation6 + $0xc] sm:$0xf]
    %v1192 = vld [vmem:[#allocation6 + $0x10] sm:$0xf]
    %v1193 = vld [vmem:[#allocation6 + $0x14] sm:$0xf]
    %v1194 = vld [vmem:[#allocation6 + $0x18] sm:$0xf]
    %v1195 = vld [vmem:[#allocation6 + $0x1c] sm:$0xf]
    %v1196 = vld [vmem:[#allocation6 + $0x20] sm:$0xf]
    %v1197 = vld [vmem:[#allocation6 + $0x24] sm:$0xf]
    %v1198 = vld [vmem:[#allocation6 + $0x28] sm:$0xf]
    %v1199 = vld [vmem:[#allocation6 + $0x2c] sm:$0xf]
    %v1200 = vld [vmem:[#allocation6 + $0x30] sm:$0xf]
    %v1201 = vld [vmem:[#allocation6 + $0x34] sm:$0xf]
    %v1202 = vld [vmem:[#allocation6 + $0x38] sm:$0xf]
    %v1203 = vld [vmem:[#allocation6 + $0x3c] sm:$0xf]
    %v1204 = vld [vmem:[#allocation6 + $0x40] sm:$0xf]
    %v1205 = vld [vmem:[#allocation6 + $0x44] sm:$0xf]
    %v1206 = vld [vmem:[#allocation6 + $0x48] sm:$0xf]
    %v1207 = vld [vmem:[#allocation6 + $0x4c] sm:$0xf]
    %v1208 = vld [vmem:[#allocation6 + $0x50] sm:$0xf]
    %v1209 = vld [vmem:[#allocation6 + $0x54] sm:$0xf]
    %v1210 = vld [vmem:[#allocation6 + $0x58] sm:$0xf]
    %v1211 = vld [vmem:[#allocation6 + $0x5c] sm:$0xf]
    %v1212 = vld [vmem:[#allocation6 + $0x60] sm:$0xf]
    %v1213 = vld [vmem:[#allocation6 + $0x64] sm:$0xf]
    %v1214 = vld [vmem:[#allocation6 + $0x68] sm:$0xf]
    %v1215 = vld [vmem:[#allocation6 + $0x6c] sm:$0xf]
    %v1216 = vld [vmem:[#allocation6 + $0x70] sm:$0xf]
    %v1217 = vld [vmem:[#allocation6 + $0x74] sm:$0xf]
    %v1218 = vld [vmem:[#allocation6 + $0x78] sm:$0xf]
    %v1219 = vld [vmem:[#allocation6 + $0x7c] sm:$0xf]
    %v1220 = vld [vmem:[#allocation6 + $0x80] sm:$0xf]
    %v1221 = vld [vmem:[#allocation6 + $0x84] sm:$0xf]
    %v1222 = vld [vmem:[#allocation6 + $0x88] sm:$0xf]
    %v1223 = vld [vmem:[#allocation6 + $0x8c] sm:$0xf]
    %v1224 = vld [vmem:[#allocation6 + $0x90] sm:$0xf]
    %v1225 = vld [vmem:[#allocation6 + $0x94] sm:$0xf]
    %v1226 = vld [vmem:[#allocation6 + $0x98] sm:$0xf]
    %v1227 = vld [vmem:[#allocation6 + $0x9c] sm:$0xf]
    %v1228 = vld [vmem:[#allocation6 + $0xa0] sm:$0xf]
    %v1229 = vld [vmem:[#allocation6 + $0xa4] sm:$0xf]
    %v1230 = vld [vmem:[#allocation6 + $0xa8] sm:$0xf]
    %v1231 = vld [vmem:[#allocation6 + $0xac] sm:$0xf]
    %v1232 = vld [vmem:[#allocation6 + $0xb0] sm:$0xf]
    %v1233 = vld [vmem:[#allocation6 + $0xb4] sm:$0xf]
    %v1234 = vld [vmem:[#allocation6 + $0xb8] sm:$0xf]
    %v1235 = vld [vmem:[#allocation6 + $0xbc] sm:$0xf]
    %v1236 = vld [vmem:[%s8] sm:$0x1]
    %v1238 = vlaneseq
    %v1239 = vshrl.u32 %v1238, 7
    %v1240 = vsub.s32 0, %v1239
    %v1241 = vrot.slane %v1236, %v1240
    %v1291 = vunpack.c.l.b16 %v1188
    %v1292 = vunpack.c.l.b16 %v1189
    %v1293 = vunpack.c.l.b16 %v1190
    %v1294 = vunpack.c.l.b16 %v1191
    %v1295 = vunpack.c.l.b16 %v1192
    %v1296 = vunpack.c.l.b16 %v1193
    %v1297 = vunpack.c.l.b16 %v1194
    %v1298 = vunpack.c.l.b16 %v1195
    %v1299 = vunpack.c.l.b16 %v1196
    %v1300 = vunpack.c.l.b16 %v1197
    %v1301 = vunpack.c.l.b16 %v1198
    %v1302 = vunpack.c.l.b16 %v1199
    %v1303 = vunpack.c.l.b16 %v1200
    %v1304 = vunpack.c.l.b16 %v1201
    %v1305 = vunpack.c.l.b16 %v1202
    %v1306 = vunpack.c.l.b16 %v1203
    %v1307 = vunpack.c.l.b16 %v1204
    %v1308 = vunpack.c.l.b16 %v1205
    %v1309 = vunpack.c.l.b16 %v1206
    %v1310 = vunpack.c.l.b16 %v1207
    %v1311 = vunpack.c.l.b16 %v1208
    %v1312 = vunpack.c.l.b16 %v1209
    %v1313 = vunpack.c.l.b16 %v1210
    %v1314 = vunpack.c.l.b16 %v1211
    %v1315 = vunpack.c.l.b16 %v1212
    %v1316 = vunpack.c.l.b16 %v1213
    %v1317 = vunpack.c.l.b16 %v1214
    %v1318 = vunpack.c.l.b16 %v1215
    %v1319 = vunpack.c.l.b16 %v1216
    %v1320 = vunpack.c.l.b16 %v1217
    %v1321 = vunpack.c.l.b16 %v1218
    %v1322 = vunpack.c.l.b16 %v1219
    %v1323 = vunpack.c.l.b16 %v1220
    %v1324 = vunpack.c.l.b16 %v1221
    %v1325 = vunpack.c.l.b16 %v1222
    %v1326 = vunpack.c.l.b16 %v1223
    %v1327 = vunpack.c.l.b16 %v1224
    %v1328 = vunpack.c.l.b16 %v1225
    %v1329 = vunpack.c.l.b16 %v1226
    %v1330 = vunpack.c.l.b16 %v1227
    %v1331 = vunpack.c.l.b16 %v1228
    %v1332 = vunpack.c.l.b16 %v1229
    %v1333 = vunpack.c.l.b16 %v1230
    %v1334 = vunpack.c.l.b16 %v1231
    %v1335 = vunpack.c.l.b16 %v1232
    %v1336 = vunpack.c.l.b16 %v1233
    %v1337 = vunpack.c.l.b16 %v1234
    %v1338 = vunpack.c.l.b16 %v1235
    %v1339 = vpack.c.b16 %v1292, %v1291
    %v1340 = vpack.c.b16 %v1294, %v1293
    %v1341 = vpack.c.b16 %v1296, %v1295
    %v1342 = vpack.c.b16 %v1298, %v1297
    %v1343 = vpack.c.b16 %v1300, %v1299
    %v1344 = vpack.c.b16 %v1302, %v1301
    %v1345 = vpack.c.b16 %v1304, %v1303
    %v1346 = vpack.c.b16 %v1306, %v1305
    %v1347 = vpack.c.b16 %v1308, %v1307
    %v1348 = vpack.c.b16 %v1310, %v1309
    %v1349 = vpack.c.b16 %v1312, %v1311
    %v1350 = vpack.c.b16 %v1314, %v1313
    %v1351 = vpack.c.b16 %v1316, %v1315
    %v1352 = vpack.c.b16 %v1318, %v1317
    %v1353 = vpack.c.b16 %v1320, %v1319
    %v1354 = vpack.c.b16 %v1322, %v1321
    %v1355 = vpack.c.b16 %v1324, %v1323
    %v1356 = vpack.c.b16 %v1326, %v1325
    %v1357 = vpack.c.b16 %v1328, %v1327
    %v1358 = vpack.c.b16 %v1330, %v1329
    %v1359 = vpack.c.b16 %v1332, %v1331
    %v1360 = vpack.c.b16 %v1334, %v1333
    %v1361 = vpack.c.b16 %v1336, %v1335
    %v1362 = vpack.c.b16 %v1338, %v1337
    %1387 = vmatprep.subr.bf16.mxu0 0
    %1388 = vmatpush1.bf16.msra.mxu0 %v1339
    %1389 = vmatprep.subr.bf16.mxu0 0
    %1390 = vmatpush1.bf16.msra.mxu0 %v1340
    %1391 = vmatprep.subr.bf16.mxu0 0
    %1392 = vmatpush1.bf16.msra.mxu0 %v1341
    %1393 = vmatprep.subr.bf16.mxu0 0
    %1394 = vmatpush1.bf16.msra.mxu0 %v1342
    %1395 = vmatprep.subr.bf16.mxu0 0
    %1396 = vmatpush1.bf16.msra.mxu0 %v1343
    %1397 = vmatprep.subr.bf16.mxu0 0
    %1398 = vmatpush1.bf16.msra.mxu0 %v1344
    %1399 = vmatprep.subr.bf16.mxu0 0
    %1400 = vmatpush1.bf16.msra.mxu0 %v1345
    %1401 = vmatprep.subr.bf16.mxu0 0
    %1402 = vmatpush1.bf16.msra.mxu0 %v1346
    %1403 = vmatprep.subr.bf16.mxu0 0
    %1404 = vmatpush1.bf16.msra.mxu0 %v1347
    %1405 = vmatprep.subr.bf16.mxu0 0
    %1406 = vmatpush1.bf16.msra.mxu0 %v1348
    %1407 = vmatprep.subr.bf16.mxu0 0
    %1408 = vmatpush1.bf16.msra.mxu0 %v1349
    %1409 = vmatprep.subr.bf16.mxu0 0
    %1410 = vmatpush1.bf16.msra.mxu0 %v1350
    %1411 = vmatprep.subr.bf16.mxu0 0
    %1412 = vmatpush1.bf16.msra.mxu0 %v1351
    %1413 = vmatprep.subr.bf16.mxu0 0
    %1414 = vmatpush1.bf16.msra.mxu0 %v1352
    %1415 = vmatprep.subr.bf16.mxu0 0
    %1416 = vmatpush1.bf16.msra.mxu0 %v1353
    %1417 = vmatprep.subr.bf16.mxu0 0
    %1418 = vmatpush1.bf16.msra.mxu0 %v1354
    %1419 = vmatprep.mubr.bf16.mxu0 %v1186
    %1420 = vmatmul.mubr.bf16.gmra.mrb[0].mxu0 %v1185
    %v1421 = vpop.f32.mrb[0].mxu0
    %v1422 = vadd.f32 %v1241, %v1421
    %v1423 = vpop.f32.mrb[0].mxu0
    %v1424 = vpop.f32.mrb[0].mxu0
    %v1425 = vpop.f32.mrb[0].mxu0
    %1426 = vdwg.mxu0
    %1427 = vmatprep.subr.bf16.mxu0 0
    %1428 = vmatpush1.bf16.msra.mxu0 %v1355
    %1429 = vmatprep.subr.bf16.mxu0 0
    %1430 = vmatpush1.bf16.msra.mxu0 %v1356
    %1431 = vmatprep.subr.bf16.mxu0 0
    %1432 = vmatpush1.bf16.msra.mxu0 %v1357
    %1433 = vmatprep.subr.bf16.mxu0 0
    %1434 = vmatpush1.bf16.msra.mxu0 %v1358
    %1435 = vmatprep.subr.bf16.mxu0 0
    %1436 = vmatpush1.bf16.msra.mxu0 %v1359
    %1437 = vmatprep.subr.bf16.mxu0 0
    %1438 = vmatpush1.bf16.msra.mxu0 %v1360
    %1439 = vmatprep.subr.bf16.mxu0 0
    %1440 = vmatpush1.bf16.msra.mxu0 %v1361
    %1441 = vmatprep.subr.bf16.mxu0 0
    %1442 = vmatpush1.bf16.msra.mxu0 %v1362
    %1443 = vmatprep.subr.bf16.mxu0 0
    %1444 = vmatpush1.bf16.msra.mxu0 0
    %1445 = vmatprep.subr.bf16.mxu0 0
    %1446 = vmatpush1.bf16.msra.mxu0 0
    %1447 = vmatprep.subr.bf16.mxu0 0
    %1448 = vmatpush1.bf16.msra.mxu0 0
    %1449 = vmatprep.subr.bf16.mxu0 0
    %1450 = vmatpush1.bf16.msra.mxu0 0
    %1451 = vmatprep.subr.bf16.mxu0 0
    %1452 = vmatpush1.bf16.msra.mxu0 0
    %1453 = vmatprep.subr.bf16.mxu0 0
    %1454 = vmatpush1.bf16.msra.mxu0 0
    %1455 = vmatprep.subr.bf16.mxu0 0
    %1456 = vmatpush1.bf16.msra.mxu0 0
    %1457 = vmatprep.subr.bf16.mxu0 0
    %1458 = vmatpush1.bf16.msra.mxu0 0
    %1459 = vmatprep.mubr.bf16.mxu0 0
    %1460 = vmatmul.mubr.bf16.gmra.mrb[0].mxu0 %v1187
    %v1461 = vpop.f32.mrb[0].mxu0
    %v1462 = vadd.f32 %v1422, %v1461
    %v1463 = vpop.f32.mrb[0].mxu0
    %v1464 = vpop.f32.mrb[0].mxu0
    %v1465 = vpop.f32.mrb[0].mxu0
    %1466 = vdwg.mxu0
    %1467 = vst [vmem:[%s9] sm:$0xff] %v1462
    // Predicated region
    $region50: #{critic_forward.1} parent=1 // pred_check
      _
    $region51: #{critic_forward.1} parent=1 // pred_check_branch
      %1469 = sbr.rel (0) target = $region53
    $region52: #{critic_forward.1} parent=1 // pred_region
      _
    $region53: #{critic_forward.1} parent=1 // pred_fallthru
      _
    // Predicated region
    $region54: #{critic_forward.1} parent=1 // pred_check
      _
    $region55: #{critic_forward.1} parent=1 // pred_check_branch
      %1471 = sbr.rel (0) target = $region57
    $region56: #{critic_forward.1} parent=1 // pred_region
      _
    $region57: #{critic_forward.1} parent=1 // pred_fallthru
      _
    %1472 = vsyncpa [#allocation3], 1
    %1473 = vsyncpa [#allocation5], 1

</llo_original>
